<compile_context>
chip_gen: v7x
topology: tpu7x:2x2x1
jax: 0.10.0
libtpu: 0.0.40
codegen_flags: <defaults>
</compile_context>

<pallas_src>
import jax
import jax.numpy as jnp
from jax.experimental import pallas as pl
from jax.experimental.pallas import tpu as pltpu

_N_INFLIGHT = 4                          # DMA copies in flight (power of two)
_CHUNK_BYTES_TARGET = 2 * 1024 * 1024    # per-chunk DMA size target


def _lane_dense_2d(t: int) -> tuple[int, int]:
    """Contiguous 2-D (rows, cols) view of a length-t flat buffer, cols % 128 == 0 when possible."""
    for c in (1024, 512, 256, 128):
        if t % c == 0:
            return t // c, c
    # Lane-sparse total size: whole-buffer DMA (contiguous HBM->HBM copy does
    # not care about lane alignment), so a single (1, t) chunk is fine.
    return 1, t


def _make_hbm_copy_kernel(rows: int, cols: int, chunk_rows: int, n_inflight: int):
    """Kernel: chunked HBM->HBM copy of a (rows, cols) buffer, n_inflight DMAs in flight."""
    n_full = rows // chunk_rows
    rem = rows - n_full * chunk_rows

    def kernel(x_hbm, o_hbm, sems):
        def start_full(i, slot):
            off = i * chunk_rows
            pltpu.make_async_copy(
                x_hbm.at[pl.ds(off, chunk_rows)],
                o_hbm.at[pl.ds(off, chunk_rows)],
                sems.at[slot],
            ).start()

        def wait_full(slot):
            # Descriptor shape only matters for the wait amount; index 0 is fine.
            pltpu.make_async_copy(
                x_hbm.at[pl.ds(0, chunk_rows)],
                o_hbm.at[pl.ds(0, chunk_rows)],
                sems.at[slot],
            ).wait()

        @pl.loop(0, n_full)
        def _(i):
            slot = i & (n_inflight - 1)

            @pl.when(i >= n_inflight)
            def _():
                # Slot was used n_inflight steps ago; wait before reusing it.
                wait_full(slot)

            start_full(i, slot)

        if rem > 0:
            rem_off = n_full * chunk_rows
            pltpu.make_async_copy(
                x_hbm.at[pl.ds(rem_off, rem)],
                o_hbm.at[pl.ds(rem_off, rem)],
                sems.at[n_inflight],
            ).start()

        # Drain all outstanding DMAs (static Python loop; n_full is a Python int).
        for slot in range(min(n_full, n_inflight)):
            wait_full(slot)
        if rem > 0:
            rem_off = n_full * chunk_rows
            pltpu.make_async_copy(
                x_hbm.at[pl.ds(rem_off, rem)],
                o_hbm.at[pl.ds(rem_off, rem)],
                sems.at[n_inflight],
            ).wait()

    return kernel


def temp_module_forward(x: jax.Array, temperature, *, materialize_copy: bool = False) -> jax.Array:
    """Pallas implementation of TempModule.forward(x, temperature) == x.

    Default (materialize_copy=False): returns `x` directly — the op is a pure
    identity, so zero HBM traffic is the optimal implementation.
    materialize_copy=True: produces a fresh buffer via a chunked HBM->HBM DMA
    Pallas kernel (no VMEM staging), running at DMA/HBM roofline.
    `temperature` is accepted for API parity and ignored, like the PyTorch module.
    """
    del temperature  # unused, exactly like the reference module

    if not materialize_copy:
        return x
    if x.size == 0:
        return x

    orig_shape = x.shape
    rows, cols = _lane_dense_2d(x.size)
    x2 = x.reshape(rows, cols)

    row_bytes = cols * x2.dtype.itemsize
    chunk_rows = max(1, min(rows, _CHUNK_BYTES_TARGET // max(1, row_bytes)))

    kernel = _make_hbm_copy_kernel(rows, cols, chunk_rows, _N_INFLIGHT)

    out = pl.pallas_call(
        kernel,
        out_shape=jax.ShapeDtypeStruct((rows, cols), x2.dtype),
        in_specs=[pl.BlockSpec(memory_space=pl.ANY)],    # raw HBM ref, no auto-DMA
        out_specs=pl.BlockSpec(memory_space=pl.ANY),     # raw HBM ref, written by DMA
        scratch_shapes=[pltpu.SemaphoreType.DMA((_N_INFLIGHT + 1,))],
    )(x2)

    return out.reshape(orig_shape)


if __name__ == "__main__":
    key = jax.random.PRNGKey(0)
    kx, kt = jax.random.split(key)
    # Small NCHW input consistent with an image-restoration arch.
    x = jax.random.normal(kx, (2, 4, 16, 16), dtype=jnp.float32)
    temperature = jax.random.uniform(kt, (), dtype=jnp.float32) + 0.5

    # Default fast path: true identity, zero bytes moved.
    y_fast = temp_module_forward(x, temperature)
    assert y_fast is x

    # Kernel path: materialized HBM->HBM DMA copy.
    y = temp_module_forward(x, temperature, materialize_copy=True)
    y = jax.block_until_ready(y)

    assert y.shape == x.shape and y.dtype == x.dtype
    assert bool(jnp.all(y == x))
    print("KERNEL_OK")
</pallas_src>

<mosaic_0001>
module attributes {stable_mosaic.version = 11 : i64} {
  func.func @kernel(%arg0: memref<2x1024xf32, #tpu.memory_space<any>>, %arg1: memref<2x1024xf32, #tpu.memory_space<any>>, %arg2: memref<5x!tpu.dma_semaphore, #tpu.memory_space<semaphore_mem>>) attributes {dimension_semantics = [], scalar_prefetch = 0 : i64, scratch_operands = 1 : i64, tpu.core_type = #tpu.core_type<tc>} {
    %c0_i32 = arith.constant 0 : i32
    %c1_i32 = arith.constant 1 : i32
    %0 = arith.muli %c0_i32, %c1_i32 : i32
    %c0_i32_0 = arith.constant 0 : i32
    %1 = arith.addi %c0_i32_0, %0 : i32
    %c3_i32 = arith.constant 3 : i32
    %2 = arith.andi %1, %c3_i32 : i32
    %c4_i32 = arith.constant 4 : i32
    %3 = arith.cmpi sge, %1, %c4_i32 : i32
    %4 = arith.extui %3 : i1 to i32
    %c0_i32_1 = arith.constant 0 : i32
    %5 = arith.cmpi ne, %4, %c0_i32_1 : i32
    scf.if %5 {
      %c0_i32_10 = arith.constant 0 : i32
      %c0_i32_11 = arith.constant 0 : i32
      %15 = tpu.memref_slice %arg0[%c0_i32_10, %c0_i32_11] : memref<2x1024xf32, #tpu.memory_space<any>> -> memref<2x1024xf32, #tpu.memory_space<any>>
      %c0_i32_12 = arith.constant 0 : i32
      %c0_i32_13 = arith.constant 0 : i32
      %16 = tpu.memref_slice %arg1[%c0_i32_12, %c0_i32_13] : memref<2x1024xf32, #tpu.memory_space<any>> -> memref<2x1024xf32, #tpu.memory_space<any>>
      %17 = tpu.memref_slice %arg2[%2] : memref<5x!tpu.dma_semaphore, #tpu.memory_space<semaphore_mem>> -> memref<1x!tpu.dma_semaphore, #tpu.memory_space<semaphore_mem>>
      %18 = tpu.memref_squeeze %17 : memref<1x!tpu.dma_semaphore, #tpu.memory_space<semaphore_mem>> -> memref<!tpu.dma_semaphore, #tpu.memory_space<semaphore_mem>>
      tpu.wait_dma2 semaphore(%18 : memref<!tpu.dma_semaphore, #tpu.memory_space<semaphore_mem>>) src(%15 : memref<2x1024xf32, #tpu.memory_space<any>>) dst(%16 : memref<2x1024xf32, #tpu.memory_space<any>>)
    } else {
    }
    %c2_i32 = arith.constant 2 : i32
    %6 = arith.muli %1, %c2_i32 : i32
    %c0_i32_2 = arith.constant 0 : i32
    %7 = tpu.memref_slice %arg0[%6, %c0_i32_2] : memref<2x1024xf32, #tpu.memory_space<any>> -> memref<2x1024xf32, #tpu.memory_space<any>>
    %c0_i32_3 = arith.constant 0 : i32
    %8 = tpu.memref_slice %arg1[%6, %c0_i32_3] : memref<2x1024xf32, #tpu.memory_space<any>> -> memref<2x1024xf32, #tpu.memory_space<any>>
    %9 = tpu.memref_slice %arg2[%2] : memref<5x!tpu.dma_semaphore, #tpu.memory_space<semaphore_mem>> -> memref<1x!tpu.dma_semaphore, #tpu.memory_space<semaphore_mem>>
    %10 = tpu.memref_squeeze %9 : memref<1x!tpu.dma_semaphore, #tpu.memory_space<semaphore_mem>> -> memref<!tpu.dma_semaphore, #tpu.memory_space<semaphore_mem>>
    tpu.enqueue_dma source(%7 : memref<2x1024xf32, #tpu.memory_space<any>>) target(%8 : memref<2x1024xf32, #tpu.memory_space<any>>) target_semaphore(%10 : memref<!tpu.dma_semaphore, #tpu.memory_space<semaphore_mem>>)
    %c1_i32_4 = arith.constant 1 : i32
    %c0_i32_5 = arith.constant 0 : i32
    %c0_i32_6 = arith.constant 0 : i32
    %c0_i32_7 = arith.constant 0 : i32
    %11 = tpu.memref_slice %arg0[%c0_i32_6, %c0_i32_7] : memref<2x1024xf32, #tpu.memory_space<any>> -> memref<2x1024xf32, #tpu.memory_space<any>>
    %c0_i32_8 = arith.constant 0 : i32
    %c0_i32_9 = arith.constant 0 : i32
    %12 = tpu.memref_slice %arg1[%c0_i32_8, %c0_i32_9] : memref<2x1024xf32, #tpu.memory_space<any>> -> memref<2x1024xf32, #tpu.memory_space<any>>
    %13 = tpu.memref_slice %arg2[%c0_i32_5] : memref<5x!tpu.dma_semaphore, #tpu.memory_space<semaphore_mem>> -> memref<1x!tpu.dma_semaphore, #tpu.memory_space<semaphore_mem>>
    %14 = tpu.memref_squeeze %13 : memref<1x!tpu.dma_semaphore, #tpu.memory_space<semaphore_mem>> -> memref<!tpu.dma_semaphore, #tpu.memory_space<semaphore_mem>>
    tpu.wait_dma2 semaphore(%14 : memref<!tpu.dma_semaphore, #tpu.memory_space<semaphore_mem>>) src(%11 : memref<2x1024xf32, #tpu.memory_space<any>>) dst(%12 : memref<2x1024xf32, #tpu.memory_space<any>>)
    return
  }
}

</mosaic_0001>

<llo_original>
// kernel: tpu_custom_call.1
$region0: #{tpu_custom_call.1}
  #allocation0 [shape = 'u32[]', space=smem, size = 0x4, offset = 0x4, fixed_abs, tag = 'smem constant byte address 0x4 - core index']
  #allocation1 [shape = 'u32[144,128]{1,0:T(1,128)}', space=vmem, size = 0x12000, scoped, tag = 'internal scratch']
  #allocation2 [shape = 's32[5]{0}', space=sflag, size = 0x14, scoped, tag = 'scratch operand']
  #allocation3 [shape = 's32[]', space=sflag, size = 0x4, offset = 0, fixed_abs, tag = 'sflag constant byte address 0x0 - dummy sync flag']
  #allocation4 [shape = 'u32[0]{0}', space=smem, size = 0, offset = 0, fixed_abs, tag = 'smem constant byte address 0x0 - null']
  %s0 = inlined_call_operand.hbm [shape: f32[2,1024], index: 0, kind: input, shape index: {}]
  %s1 = inlined_call_operand.hbm [shape: f32[2,1024], index: 1, kind: output, shape index: {}]
  %s2 = sld [smem:[#allocation0]]
  $region2: #{tpu_custom_call.1} parent=0
    _
  %s4 = ssub.s32 1, %s2
  %s5 = scalar_select 0, %s4, %s2
  %s7 = sshll.u32 1, 14
  %s8 = sxor.u32 4294967295, %s7
  %s11 = sshll.u32 3, 24
  %s12 = sxor.u32 4294967295, %s11
  %s13 = sand.u32 0, %s12
  %s15 = sor.u32 %s13, 0
  %18 = dma.general %s0, 256, %s1, [#allocation2], [#allocation3], [#allocation4], %s15, 0
  %s19 = smul.u32 2, 1
  %s20 = smul.u32 %s19, 8
  %s21 = sshll.u32 %s20, 4
  %22 = dma.done [#allocation2], %s21
  %23 = vsyncmov [#allocation2]
  %s24 = vpop.sfrf %23
  %p25 = scmp.eq.s32.totalorder %s24, 0
  %p26 = pneg %p25
  %28 = shalt.err (%p26)
  %s29 = scalar_lea.sflag [#allocation2], 1
  %30 = vsyncmov %s29
  %s31 = vpop.sfrf %30
  %p32 = scmp.eq.s32.totalorder %s31, 0
  %p33 = pneg %p32
  %35 = shalt.err (%p33)
  %s36 = scalar_lea.sflag [#allocation2], 2
  %37 = vsyncmov %s36
  %s38 = vpop.sfrf %37
  %p39 = scmp.eq.s32.totalorder %s38, 0
  %p40 = pneg %p39
  %42 = shalt.err (%p40)
  %s43 = scalar_lea.sflag [#allocation2], 3
  %44 = vsyncmov %s43
  %s45 = vpop.sfrf %44
  %p46 = scmp.eq.s32.totalorder %s45, 0
  %p47 = pneg %p46
  %49 = shalt.err (%p47)
  %s50 = scalar_lea.sflag [#allocation2], 4
  %51 = vsyncmov %s50
  %s52 = vpop.sfrf %51
  %p53 = scmp.eq.s32.totalorder %s52, 0
  %p54 = pneg %p53
  %56 = shalt.err (%p54)

</llo_original>
